<compile_context>
chip_gen: v7x
topology: tpu7x:2x2x1
jax: 0.10.0
libtpu: 0.0.40
codegen_flags: <defaults>
</compile_context>

<pallas_src>
import functools

import numpy as np
import jax
import jax.numpy as jnp
from jax.experimental import pallas as pl
from jax.experimental.pallas import tpu as pltpu


def _hidden_block_kernel(x_ref, w_ref, params_ref, *rest, dropout_rate: float,
                         keep_threshold: int, eps: float):
    # rest = (bits_ref, o_ref) when dropout is active, else (o_ref,)
    if dropout_rate > 0.0:
        bits_ref, o_ref = rest
    else:
        (o_ref,) = rest

    # ---- Linear on the MXU: bf16 operands, f32 accumulation. Weight is in torch
    #      [D_out, D_in] layout; contract dim 1 of both operands.
    x = x_ref[...].astype(jnp.bfloat16)                        # (B, D_in)
    w = w_ref[...].astype(jnp.bfloat16)                        # (Ft, D_in)
    h = jax.lax.dot_general(
        x, w, dimension_numbers=(((1,), (1,)), ((), ())),
        preferred_element_type=jnp.float32)                    # (B, Ft) f32

    b = params_ref[0:1, :]                                     # (1, Ft) linear bias
    g = params_ref[1:2, :]                                     # (1, Ft) BN gamma
    bt = params_ref[2:3, :]                                    # (1, Ft) BN beta

    # ---- bias + ReLU (elementwise tail in f32: v5e VPU has no bf16 path) ----
    h = jnp.maximum(h + b, 0.0)

    # ---- BatchNorm1d (training): single-pass biased variance, fused scale/shift ----
    mean = jnp.mean(h, axis=0, keepdims=True)                  # (1, Ft)
    mean_sq = jnp.mean(h * h, axis=0, keepdims=True)           # (1, Ft)
    var = mean_sq - mean * mean                                # biased, like torch
    scale = g * jax.lax.rsqrt(var + eps)
    shift = bt - mean * scale

    if dropout_rate > 0.0:
        # Inverted dropout; 1/(1-p) folded into the BN scale/shift.
        inv_keep = 1.0 / (1.0 - dropout_rate)
        scale = scale * inv_keep
        shift = shift * inv_keep
        keep = bits_ref[...] >= np.uint32(keep_threshold)      # P(keep) = 1 - p
        out = jnp.where(keep, h * scale + shift, 0.0)
    else:
        out = h * scale + shift

    o_ref[...] = out.astype(o_ref.dtype)


def hidden_block_forward(x, weight, bias, gamma, beta, *,
                         dropout_rate: float = 0.1, eps: float = 1e-5,
                         dropout_key=None, feat_tile: int = 128):
    """HiddenBlock forward (training mode).

    x: [B, D_in]; weight: [D_out, D_in] (torch layout); bias/gamma/beta: [D_out].
    """
    x = jnp.asarray(x, jnp.float32)
    weight = jnp.asarray(weight, jnp.float32)
    B, d_in = x.shape
    d_out = weight.shape[0]

    # Lane-dense output: pad the feature axis to a multiple of 128. Padded columns
    # compute to exactly 0 (zero weight rows / zero bias) and are sliced off below.
    d_out_pad = int(pl.cdiv(d_out, feat_tile)) * feat_tile
    pad = d_out_pad - d_out

    w_p = jnp.pad(weight, ((0, pad), (0, 0)))                  # (D_out_pad, D_in)
    params = jnp.concatenate([                                 # one (3, D_out_pad) DMA
        jnp.pad(jnp.asarray(bias, jnp.float32), (0, pad)).reshape(1, d_out_pad),
        jnp.pad(jnp.asarray(gamma, jnp.float32), (0, pad),
                constant_values=1.0).reshape(1, d_out_pad),
        jnp.pad(jnp.asarray(beta, jnp.float32), (0, pad)).reshape(1, d_out_pad),
    ], axis=0)

    use_dropout = dropout_rate > 0.0
    if use_dropout:
        if dropout_key is None:
            dropout_key = jax.random.PRNGKey(0)
        bits = jax.random.bits(dropout_key, (B, d_out_pad), dtype=jnp.uint32)
        keep_threshold = min(int(round(dropout_rate * float(2 ** 32))), 2 ** 32 - 1)
    else:
        bits = None
        keep_threshold = 0

    kernel = functools.partial(
        _hidden_block_kernel,
        dropout_rate=float(dropout_rate),
        keep_threshold=keep_threshold,
        eps=float(eps))

    n_feat_tiles = d_out_pad // feat_tile

    in_specs = [
        pl.BlockSpec((B, d_in), lambda j: (0, 0)),              # x (whole batch, fetched once)
        pl.BlockSpec((feat_tile, d_in), lambda j: (j, 0)),      # weight (torch layout)
        pl.BlockSpec((3, feat_tile), lambda j: (0, j)),         # packed bias/gamma/beta
    ]
    operands = [x, w_p, params]
    if use_dropout:
        in_specs.append(pl.BlockSpec((B, feat_tile), lambda j: (0, j)))  # dropout bits
        operands.append(bits)

    grid_spec = pltpu.PrefetchScalarGridSpec(
        num_scalar_prefetch=0,
        grid=(n_feat_tiles,),   # BN stats are per-feature -> feature tiles independent
        in_specs=in_specs,
        out_specs=pl.BlockSpec((B, feat_tile), lambda j: (0, j)),
    )

    out_pad = pl.pallas_call(
        kernel,
        out_shape=jax.ShapeDtypeStruct((B, d_out_pad), jnp.float32),
        grid_spec=grid_spec,
        compiler_params=pltpu.CompilerParams(
            dimension_semantics=("parallel",),   # feature tiles shard across TCs (v7x)
            vmem_limit_bytes=64 << 20),
    )(*operands)

    return out_pad[:, :d_out]


if __name__ == "__main__":
    # Small shapes consistent with the module: batch=16, input_dim=32, output_dim=64
    B, D_IN, D_OUT = 16, 32, 64
    DROPOUT_RATE = 0.1

    key = jax.random.PRNGKey(0)
    kx, kw, kb, kd = jax.random.split(key, 4)

    x = jax.random.normal(kx, (B, D_IN), dtype=jnp.float32)

    # Deterministic parameter init (nn.Linear-style uniform bound); BN affine defaults.
    bound = 1.0 / (D_IN ** 0.5)
    weight = jax.random.uniform(kw, (D_OUT, D_IN), jnp.float32, -bound, bound)  # torch layout
    bias = jax.random.uniform(kb, (D_OUT,), jnp.float32, -bound, bound)
    gamma = jnp.ones((D_OUT,), jnp.float32)   # BatchNorm1d weight default
    beta = jnp.zeros((D_OUT,), jnp.float32)   # BatchNorm1d bias default

    out = hidden_block_forward(x, weight, bias, gamma, beta,
                               dropout_rate=DROPOUT_RATE, dropout_key=kd)
    out = jax.block_until_ready(out)

    assert out.shape == (B, D_OUT), out.shape
    assert bool(jnp.all(jnp.isfinite(out)))
    print("KERNEL_OK")
</pallas_src>

<mosaic_0001>
module attributes {stable_mosaic.version = 11 : i64} {
  func.func @_hidden_block_kernel(%arg0: i32, %arg1: memref<16x32xf32, #tpu.memory_space<vmem>>, %arg2: memref<128x32xf32, #tpu.memory_space<vmem>>, %arg3: memref<3x128xf32, #tpu.memory_space<vmem>>, %arg4: memref<16x128xi32, #tpu.memory_space<vmem>>, %arg5: memref<16x128xf32, #tpu.memory_space<vmem>>) attributes {dimension_semantics = [#tpu.dimension_semantics<parallel>], iteration_bounds = array<i64: 1>, scalar_prefetch = 0 : i64, scratch_operands = 0 : i64, tpu.core_type = #tpu.core_type<tc>, window_params = [{pipeline_mode = #tpu.pipeline_mode<synchronous>, transform_indices = @transform_0, window_bounds = array<i64: 16, 32>}, {transform_indices = @transform_1, window_bounds = array<i64: 128, 32>}, {transform_indices = @transform_2, window_bounds = array<i64: 3, 128>}, {transform_indices = @transform_3, window_bounds = array<i64: 16, 128>}, {transform_indices = @transform_4, window_bounds = array<i64: 16, 128>}]} {
    %c0 = arith.constant 0 : index
    %c0_0 = arith.constant 0 : index
    %0 = vector.load %arg1[%c0, %c0_0] : memref<16x32xf32, #tpu.memory_space<vmem>>, vector<16x32xf32>
    %1 = arith.truncf %0 : vector<16x32xf32> to vector<16x32xbf16>
    %c0_1 = arith.constant 0 : index
    %c0_2 = arith.constant 0 : index
    %2 = vector.load %arg2[%c0_1, %c0_2] : memref<128x32xf32, #tpu.memory_space<vmem>>, vector<128x32xf32>
    %3 = arith.truncf %2 : vector<128x32xf32> to vector<128x32xbf16>
    %cst = arith.constant dense<0.000000e+00> : vector<16x128xf32>
    %4 = tpu.matmul %1, %3, %cst {dimension_numbers = #tpu.dot_dimension_numbers<[1], [1], [0], [0], [0, 0, 1, 0], [], []>} : vector<16x32xbf16>, vector<128x32xbf16>, vector<16x128xf32> -> vector<16x128xf32>
    %c0_3 = arith.constant 0 : index
    %c0_4 = arith.constant 0 : index
    %5 = vector.load %arg3[%c0_3, %c0_4] : memref<3x128xf32, #tpu.memory_space<vmem>>, vector<1x128xf32>
    %c1 = arith.constant 1 : index
    %c0_5 = arith.constant 0 : index
    %6 = vector.load %arg3[%c1, %c0_5] : memref<3x128xf32, #tpu.memory_space<vmem>>, vector<1x128xf32>
    %c2 = arith.constant 2 : index
    %c0_6 = arith.constant 0 : index
    %7 = vector.load %arg3[%c2, %c0_6] : memref<3x128xf32, #tpu.memory_space<vmem>>, vector<1x128xf32>
    %8 = vector.broadcast %5 : vector<1x128xf32> to vector<16x128xf32>
    %9 = arith.addf %4, %8 : vector<16x128xf32>
    %cst_7 = arith.constant 0.000000e+00 : f32
    %10 = vector.broadcast %cst_7 : f32 to vector<16x128xf32>
    %11 = arith.maximumf %9, %10 : vector<16x128xf32>
    %cst_8 = arith.constant dense<0.000000e+00> : vector<128xf32>
    %12 = vector.multi_reduction <add>, %11, %cst_8 [0] : vector<16x128xf32> to vector<128xf32>
    %13 = vector.shape_cast %12 : vector<128xf32> to vector<1x128xf32>
    %cst_9 = arith.constant 1.600000e+01 : f32
    %14 = vector.broadcast %cst_9 : f32 to vector<1x128xf32>
    %15 = arith.divf %13, %14 : vector<1x128xf32>
    %16 = arith.mulf %11, %11 : vector<16x128xf32>
    %cst_10 = arith.constant dense<0.000000e+00> : vector<128xf32>
    %17 = vector.multi_reduction <add>, %16, %cst_10 [0] : vector<16x128xf32> to vector<128xf32>
    %18 = vector.shape_cast %17 : vector<128xf32> to vector<1x128xf32>
    %cst_11 = arith.constant 1.600000e+01 : f32
    %19 = vector.broadcast %cst_11 : f32 to vector<1x128xf32>
    %20 = arith.divf %18, %19 : vector<1x128xf32>
    %21 = arith.mulf %15, %15 : vector<1x128xf32>
    %22 = arith.subf %20, %21 : vector<1x128xf32>
    %cst_12 = arith.constant 9.99999974E-6 : f32
    %23 = vector.broadcast %cst_12 : f32 to vector<1x128xf32>
    %24 = arith.addf %22, %23 : vector<1x128xf32>
    %25 = math.rsqrt %24 : vector<1x128xf32>
    %26 = arith.mulf %6, %25 : vector<1x128xf32>
    %27 = arith.mulf %15, %26 : vector<1x128xf32>
    %28 = arith.subf %7, %27 : vector<1x128xf32>
    %cst_13 = arith.constant 1.11111116 : f32
    %29 = vector.broadcast %cst_13 : f32 to vector<1x128xf32>
    %30 = arith.mulf %26, %29 : vector<1x128xf32>
    %cst_14 = arith.constant 1.11111116 : f32
    %31 = vector.broadcast %cst_14 : f32 to vector<1x128xf32>
    %32 = arith.mulf %28, %31 : vector<1x128xf32>
    %c0_15 = arith.constant 0 : index
    %c0_16 = arith.constant 0 : index
    %33 = vector.load %arg4[%c0_15, %c0_16] : memref<16x128xi32, #tpu.memory_space<vmem>>, vector<16x128xi32>
    %c429496730_i32 = arith.constant 429496730 : i32
    %34 = vector.broadcast %c429496730_i32 : i32 to vector<16x128xi32>
    %35 = arith.cmpi uge, %33, %34 : vector<16x128xi32>
    %36 = vector.broadcast %30 : vector<1x128xf32> to vector<16x128xf32>
    %37 = arith.mulf %11, %36 : vector<16x128xf32>
    %38 = vector.broadcast %32 : vector<1x128xf32> to vector<16x128xf32>
    %39 = arith.addf %37, %38 : vector<16x128xf32>
    %cst_17 = arith.constant 0.000000e+00 : f32
    %40 = vector.broadcast %cst_17 : f32 to vector<16x128xf32>
    %41 = arith.select %35, %39, %40 : vector<16x128xi1>, vector<16x128xf32>
    %c0_18 = arith.constant 0 : index
    %c0_19 = arith.constant 0 : index
    %42 = vector.load %arg5[%c0_18, %c0_19] : memref<16x128xf32, #tpu.memory_space<vmem>>, vector<16x128xf32>
    tpu.vector_store %arg5[%c0_18, %c0_19], %41 {strides = array<i32>} : memref<16x128xf32, #tpu.memory_space<vmem>>, vector<16x128xf32>,
    return
  }
  func.func @transform_0(%arg0: i32) -> (i32, i32) {
    %c0_i32 = arith.constant 0 : i32
    %c0_i32_0 = arith.constant 0 : i32
    %c0_i32_1 = arith.constant 0 : i32
    return %c0_i32, %c0_i32_0 : i32, i32
  }
  func.func @transform_1(%arg0: i32) -> (i32, i32) {
    %c0_i32 = arith.constant 0 : i32
    %c0_i32_0 = arith.constant 0 : i32
    return %arg0, %c0_i32 : i32, i32
  }
  func.func @transform_2(%arg0: i32) -> (i32, i32) {
    %c0_i32 = arith.constant 0 : i32
    %c0_i32_0 = arith.constant 0 : i32
    return %c0_i32, %arg0 : i32, i32
  }
  func.func @transform_3(%arg0: i32) -> (i32, i32) {
    %c0_i32 = arith.constant 0 : i32
    %c0_i32_0 = arith.constant 0 : i32
    return %c0_i32, %arg0 : i32, i32
  }
  func.func @transform_4(%arg0: i32) -> (i32, i32) {
    %c0_i32 = arith.constant 0 : i32
    %c0_i32_0 = arith.constant 0 : i32
    return %c0_i32, %arg0 : i32, i32
  }
}

</mosaic_0001>

<llo_original>
// kernel: tpu_custom_call.1
$region0: #{tpu_custom_call.1}
  #allocation0 [shape = 'u32[]', space=smem, size = 0x4, offset = 0x4, fixed_abs, tag = 'smem constant byte address 0x4 - core index']
  #allocation1 [shape = 'u32[144,128]{1,0:T(1,128)}', space=vmem, size = 0x12000, scoped, tag = 'internal scratch']
  %s0 = inlined_call_operand.hbm [shape: f32[16,32], index: 0, kind: input, shape index: {}]
  %s1 = inlined_call_operand.hbm [shape: f32[128,32], index: 1, kind: input, shape index: {}]
  %s2 = inlined_call_operand.hbm [shape: f32[3,128], index: 2, kind: input, shape index: {}]
  %s3 = inlined_call_operand.hbm [shape: u32[16,128], index: 3, kind: input, shape index: {}]
  %s4 = inlined_call_operand.hbm [shape: f32[16,128], index: 4, kind: output, shape index: {}]
  %s5 = sld [smem:[#allocation0]]
  $region42: #{tpu_custom_call.1} parent=0
    _
  %s7 = ssub.s32 1, %s5
  %s8 = scalar_select 0, %s7, %s5
  $region1: #{tpu_custom_call.1} parent=0
    #allocation2 [shape = 'u8[8192]{0}', space=vmem, size = 0x2000, scoped, tag = 'input window, operand 0, single buffered']
    #allocation3 [shape = 's32[1]{0}', space=sflag, size = 0x4, scoped, tag = 'scoped memory for tpu_custom_call.1']
    #allocation4 [shape = 's32[1]{0}', space=sflag, size = 0x4, scoped, tag = 'scoped memory for tpu_custom_call.1']
    #allocation5 [shape = 'u8[65536]{0}', space=vmem, size = 0x10000, scoped, tag = 'input window, operand 1, single buffered']
    #allocation6 [shape = 's32[1]{0}', space=sflag, size = 0x4, scoped, tag = 'scoped memory for tpu_custom_call.1']
    #allocation7 [shape = 'u8[2048]{0}', space=vmem, size = 0x800, scoped, tag = 'input window, operand 2, single buffered']
    #allocation8 [shape = 'u8[8192]{0}', space=vmem, size = 0x2000, scoped, tag = 'input window, operand 3, single buffered']
    #allocation9 [shape = 's32[1]{0}', space=sflag, size = 0x4, scoped, tag = 'scoped memory for tpu_custom_call.1']
    #allocation10 [shape = 'u8[8192]{0}', space=vmem, size = 0x2000, scoped, tag = 'output window, operand 0, single buffered']
    %9 = vsyncpa [#allocation3], 0
    %10 = vsyncpa [#allocation6], 0
    %11 = vsyncpa [#allocation9], 0
    %12 = vsyncpa [#allocation4], 0
    // Predicated region
    $region2: #{tpu_custom_call.1} parent=1 // pred_check
      _
    $region3: #{tpu_custom_call.1} parent=1 // pred_check_branch
      %14 = sbr.rel (0) target = $region5
    $region4: #{tpu_custom_call.1} parent=1 // pred_region
      %s16 = ssub.s32 256, 256
      %17 = vsyncadd [#allocation3], %s16
      %s18 = sshll.u32 [#allocation2], 4
      %s19 = int_to_ptr.vmem [resolvable:$true] %s18
      %24 = dma.hbm_to_vmem [thread:$0]  %s0, 256, %s19, [#allocation3], 128, 128, 8
    $region5: #{tpu_custom_call.1} parent=1 // pred_fallthru
      _
    // Predicated region
    $region6: #{tpu_custom_call.1} parent=1 // pred_check
      _
    $region7: #{tpu_custom_call.1} parent=1 // pred_check_branch
      %26 = sbr.rel (0) target = $region9
    $region8: #{tpu_custom_call.1} parent=1 // pred_region
      %s28 = ssub.s32 2048, 2048
      %29 = vsyncadd [#allocation6], %s28
      %s30 = sshll.u32 [#allocation5], 4
      %s31 = int_to_ptr.vmem [resolvable:$true] %s30
      %36 = dma.hbm_to_vmem [thread:$0]  %s1, 2048, %s31, [#allocation6], 128, 128, 8
    $region9: #{tpu_custom_call.1} parent=1 // pred_fallthru
      _
    // Predicated region
    $region10: #{tpu_custom_call.1} parent=1 // pred_check
      _
    $region11: #{tpu_custom_call.1} parent=1 // pred_check_branch
      %38 = sbr.rel (0) target = $region13
    $region12: #{tpu_custom_call.1} parent=1 // pred_region
      %s40 = ssub.s32 64, 64
      %41 = vsyncadd [#allocation6], %s40
      %s43 = sshll.u32 [#allocation7], 4
      %s44 = int_to_ptr.vmem [resolvable:$true] %s43
      %46 = dma.hbm_to_vmem [thread:$0]  %s2, 64, %s44, [#allocation6]
    $region13: #{tpu_custom_call.1} parent=1 // pred_fallthru
      _
    // Predicated region
    $region14: #{tpu_custom_call.1} parent=1 // pred_check
      _
    $region15: #{tpu_custom_call.1} parent=1 // pred_check_branch
      %48 = sbr.rel (0) target = $region17
    $region16: #{tpu_custom_call.1} parent=1 // pred_region
      %s50 = ssub.s32 256, 256
      %51 = vsyncadd [#allocation9], %s50
      %s52 = sshll.u32 [#allocation8], 4
      %s53 = int_to_ptr.vmem [resolvable:$true] %s52
      %58 = dma.hbm_to_vmem [thread:$0]  %s3, 256, %s53, [#allocation9], 128, 128, 8
    $region17: #{tpu_custom_call.1} parent=1 // pred_fallthru
      _
    // Predicated region
    $region18: #{tpu_custom_call.1} parent=1 // pred_check
      _
    $region19: #{tpu_custom_call.1} parent=1 // pred_check_branch
      %60 = sbr.rel (0) target = $region21
    $region20: #{tpu_custom_call.1} parent=1 // pred_region
      %61 = dma.done [#allocation3], 256
    $region21: #{tpu_custom_call.1} parent=1 // pred_fallthru
      _
    // Predicated region
    $region22: #{tpu_custom_call.1} parent=1 // pred_check
      _
    $region23: #{tpu_custom_call.1} parent=1 // pred_check_branch
      %63 = sbr.rel (0) target = $region25
    $region24: #{tpu_custom_call.1} parent=1 // pred_region
      %64 = dma.done [#allocation6], 2048
    $region25: #{tpu_custom_call.1} parent=1 // pred_fallthru
      _
    // Predicated region
    $region26: #{tpu_custom_call.1} parent=1 // pred_check
      _
    $region27: #{tpu_custom_call.1} parent=1 // pred_check_branch
      %66 = sbr.rel (0) target = $region29
    $region28: #{tpu_custom_call.1} parent=1 // pred_region
      %67 = dma.done [#allocation6], 64
    $region29: #{tpu_custom_call.1} parent=1 // pred_fallthru
      _
    // Predicated region
    $region30: #{tpu_custom_call.1} parent=1 // pred_check
      _
    $region31: #{tpu_custom_call.1} parent=1 // pred_check_branch
      %69 = sbr.rel (0) target = $region33
    $region32: #{tpu_custom_call.1} parent=1 // pred_region
      %70 = dma.done [#allocation9], 256
    $region33: #{tpu_custom_call.1} parent=1 // pred_fallthru
      _
    %v72 = vld [vmem:[#allocation2] sm:$0xff]
    %v73 = vld [vmem:[#allocation2 + $0x8] sm:$0xff]
    %v74 = vpack.c.bf16 %v73, %v72
    %v75 = vld [vmem:[#allocation5] sm:$0xff]
    %v76 = vld [vmem:[#allocation5 + $0x8] sm:$0xff]
    %v77 = vld [vmem:[#allocation5 + $0x10] sm:$0xff]
    %v78 = vld [vmem:[#allocation5 + $0x18] sm:$0xff]
    %v79 = vld [vmem:[#allocation5 + $0x20] sm:$0xff]
    %v80 = vld [vmem:[#allocation5 + $0x28] sm:$0xff]
    %v81 = vld [vmem:[#allocation5 + $0x30] sm:$0xff]
    %v82 = vld [vmem:[#allocation5 + $0x38] sm:$0xff]
    %v83 = vld [vmem:[#allocation5 + $0x40] sm:$0xff]
    %v84 = vld [vmem:[#allocation5 + $0x48] sm:$0xff]
    %v85 = vld [vmem:[#allocation5 + $0x50] sm:$0xff]
    %v86 = vld [vmem:[#allocation5 + $0x58] sm:$0xff]
    %v87 = vld [vmem:[#allocation5 + $0x60] sm:$0xff]
    %v88 = vld [vmem:[#allocation5 + $0x68] sm:$0xff]
    %v89 = vld [vmem:[#allocation5 + $0x70] sm:$0xff]
    %v90 = vld [vmem:[#allocation5 + $0x78] sm:$0xff]
    %v91 = vpack.c.bf16 %v76, %v75
    %v92 = vpack.c.bf16 %v78, %v77
    %v93 = vpack.c.bf16 %v80, %v79
    %v94 = vpack.c.bf16 %v82, %v81
    %v95 = vpack.c.bf16 %v84, %v83
    %v96 = vpack.c.bf16 %v86, %v85
    %v97 = vpack.c.bf16 %v88, %v87
    %v98 = vpack.c.bf16 %v90, %v89
    %v99 = vld [vmem:[#allocation7] sm:$0x1]
    %v100 = vld [vmem:[#allocation7 + $0x1] sm:$0x1]
    %v101 = vld [vmem:[#allocation7 + $0x2] sm:$0x1]
    %v102 = vlaneseq
    %v103 = vshrl.u32 %v102, 7
    %v104 = vsub.s32 0, %v103
    %v105 = vrot.slane %v99, %v104
    %vm106 = vcmask 261120
    %v108 = vsel %vm106, %v74, 0
    %v111 = vsel %vm106, %v91, 0
    %v114 = vsel %vm106, %v92, 0
    %v117 = vsel %vm106, %v93, 0
    %v120 = vsel %vm106, %v94, 0
    %v123 = vsel %vm106, %v95, 0
    %v126 = vsel %vm106, %v96, 0
    %v129 = vsel %vm106, %v97, 0
    %v132 = vsel %vm106, %v98, 0
    %134 = vmatprep.subr.bf16.mxu0 0
    %135 = vmatpush1.bf16.xpose.msra.mxu0 %v111
    %136 = vmatprep.subr.bf16.mxu0 0
    %137 = vmatpush1.bf16.xpose.msra.mxu0 %v114
    %138 = vmatprep.subr.bf16.mxu0 0
    %139 = vmatpush1.bf16.xpose.msra.mxu0 %v117
    %140 = vmatprep.subr.bf16.mxu0 0
    %141 = vmatpush1.bf16.xpose.msra.mxu0 %v120
    %142 = vmatprep.subr.bf16.mxu0 0
    %143 = vmatpush1.bf16.xpose.msra.mxu0 %v123
    %144 = vmatprep.subr.bf16.mxu0 0
    %145 = vmatpush1.bf16.xpose.msra.mxu0 %v126
    %146 = vmatprep.subr.bf16.mxu0 0
    %147 = vmatpush1.bf16.xpose.msra.mxu0 %v129
    %148 = vmatprep.subr.bf16.mxu0 0
    %149 = vmatpush1.bf16.xpose.msra.mxu0 %v132
    %150 = vmatprep.subr.bf16.mxu0 0
    %151 = vmatpush1.bf16.xpose.msra.mxu0 0
    %152 = vmatprep.subr.bf16.mxu0 0
    %153 = vmatpush1.bf16.xpose.msra.mxu0 0
    %154 = vmatprep.subr.bf16.mxu0 0
    %155 = vmatpush1.bf16.xpose.msra.mxu0 0
    %156 = vmatprep.subr.bf16.mxu0 0
    %157 = vmatpush1.bf16.xpose.msra.mxu0 0
    %158 = vmatprep.subr.bf16.mxu0 0
    %159 = vmatpush1.bf16.xpose.msra.mxu0 0
    %160 = vmatprep.subr.bf16.mxu0 0
    %161 = vmatpush1.bf16.xpose.msra.mxu0 0
    %162 = vmatprep.subr.bf16.mxu0 0
    %163 = vmatpush1.bf16.xpose.msra.mxu0 0
    %164 = vmatprep.subr.bf16.mxu0 0
    %165 = vmatpush1.bf16.xpose.msra.mxu0 0
    %166 = vmatprep.mubr.bf16.mxu0 0
    %167 = vmatmul.mubr.bf16.gmra.mrb[0].mxu0 %v108
    %v168 = vpop.f32.mrb[0].mxu0
    %v169 = vadd.f32 %v105, %v168
    %v170 = vpop.f32.mrb[0].mxu0
    %v171 = vpop.f32.mrb[0].mxu0
    %v172 = vadd.f32 %v105, %v171
    %v173 = vpop.f32.mrb[0].mxu0
    %174 = vdwg.mxu0
    %v175 = vmax.f32 %v169, 0.0
    %v176 = vmax.f32 %v172, 0.0
    %v177 = vadd.f32 %v175, %v176
    %v178 = vrot.slane %v177, 4
    %v179 = vadd.f32 %v177, %v178
    %v180 = vrot.slane %v179, 2
    %v181 = vadd.f32 %v179, %v180
    %v182 = vrot.slane %v181, 1
    %v183 = vadd.f32 %v181, %v182
    %v184 = vrcp.pop 16.0
    %v185 = vmul.f32 %v183, %v184
    %v186 = vmul.f32 %v175, %v175
    %v187 = vmul.f32 %v176, %v176
    %v188 = vadd.f32 %v186, %v187
    %v189 = vrot.slane %v188, 4
    %v190 = vadd.f32 %v188, %v189
    %v191 = vrot.slane %v190, 2
    %v192 = vadd.f32 %v190, %v191
    %v193 = vrot.slane %v192, 1
    %v194 = vadd.f32 %v192, %v193
    %v195 = vmul.f32 %v194, %v184
    %v196 = vmul.f32 %v185, %v185
    %v197 = vsub.f32 %v195, %v196
    %v198 = vadd.f32 %v197, 1e-05
    %v199 = vrsqrt.pop %v198
    %v200 = vmul.f32 %v100, %v199
    %v201 = vmul.f32 %v185, %v200
    %v202 = vsub.f32 %v101, %v201
    %v203 = vmul.f32 %v200, 1.1111112
    %v204 = vmul.f32 %v202, 1.1111112
    %v205 = vld [vmem:[#allocation8] sm:$0xff]
    %v206 = vld [vmem:[#allocation8 + $0x8] sm:$0xff]
    %vm207 = vcmp.ge.u32.totalorder %v205, 429496730
    %vm208 = vcmp.ge.u32.totalorder %v206, 429496730
    %v209 = vlaneseq
    %v210 = vshrl.u32 %v209, 7
    %v211 = vsub.s32 0, %v210
    %v212 = vrot.slane %v203, %v211
    %v213 = vmul.f32 %v175, %v212
    %v214 = vmul.f32 %v176, %v212
    %v215 = vlaneseq
    %v216 = vshrl.u32 %v215, 7
    %v217 = vsub.s32 0, %v216
    %v218 = vrot.slane %v204, %v217
    %v219 = vadd.f32 %v213, %v218
    %v220 = vadd.f32 %v214, %v218
    %v221 = vsel %vm207, %v219, 0.0
    %v222 = vsel %vm208, %v220, 0.0
    %223 = vst [vmem:[#allocation10] sm:$0xff] %v221
    %224 = vst [vmem:[#allocation10 + $0x8] sm:$0xff] %v222
    // Predicated region
    $region34: #{tpu_custom_call.1} parent=1 // pred_check
      _
    $region35: #{tpu_custom_call.1} parent=1 // pred_check_branch
      %226 = sbr.rel (0) target = $region37
    $region36: #{tpu_custom_call.1} parent=1 // pred_region
      %s228 = ssub.s32 256, 256
      %229 = vsyncadd [#allocation4], %s228
      %s230 = sshll.u32 [#allocation10], 4
      %s231 = int_to_ptr.vmem [resolvable:$true] %s230
      %236 = dma.vmem_to_hbm [thread:$0]  %s231, 256, %s4, [#allocation4], 128, 128, 8
    $region37: #{tpu_custom_call.1} parent=1 // pred_fallthru
      _
    // Predicated region
    $region38: #{tpu_custom_call.1} parent=1 // pred_check
      _
    $region39: #{tpu_custom_call.1} parent=1 // pred_check_branch
      %238 = sbr.rel (0) target = $region41
    $region40: #{tpu_custom_call.1} parent=1 // pred_region
      %239 = dma.done [#allocation4], 256
    $region41: #{tpu_custom_call.1} parent=1 // pred_fallthru
      _
    %240 = vsyncpa [#allocation3], 1
    %241 = vsyncpa [#allocation6], 1
    %242 = vsyncpa [#allocation9], 1
    %243 = vsyncpa [#allocation4], 1

</llo_original>
